<compile_context>
chip_gen: v7x
topology: tpu7x:2x2x1
jax: 0.10.0
libtpu: 0.0.40
codegen_flags: <defaults>
</compile_context>

<pallas_src>
import jax
import jax.numpy as jnp
from jax.experimental import pallas as pl
from jax.experimental.pallas import tpu as pltpu

IN_FEATURES = 2048
HIDDEN = 128
OUT_FEATURES = 1

# 1024 rows * 2048 feats * 4 B = 8 MiB per x tile, 16 MiB double-buffered.
TILE_B = 1024


def _round_up(n, m):
    return ((n + m - 1) // m) * m


def folded_linear_kernel(x_ref, w_ref, b_ref, o_ref):
    # x_ref: (tile_b, 2048) VMEM tile; w_ref: (1, 2048) VMEM (same block every step);
    # b_ref: (1, 1) SMEM scalar. Multiply on the VPU + lane-reduce on the XLU:
    # both hide under the tile DMA, and we skip MXU push/pop for an N=1 matmul.
    y = jnp.sum(x_ref[...] * w_ref[...], axis=-1, keepdims=True)  # (tile_b, 1) f32
    o_ref[...] = (y + b_ref[0, 0]).astype(o_ref.dtype)


def linear_model_forward(x, w1, b1, w2, b2):
    """Forward pass of LinearModel: fc2(fc1(x)). x: (B, 2048) f32 -> (B, 1) f32."""
    B = x.shape[0]

    # Exact affine fold (no nonlinearity between fc1 and fc2).
    w_eff = (w1 @ w2).T                          # (1, 2048)
    b_eff = (b1 @ w2 + b2).astype(jnp.float32)   # (1, 1)

    # Batch tiling: sublane rule needs tile_b % 8 == 0; no padding of x — the grid is
    # ragged and Pallas masks the partial last block's out-of-range output rows.
    tile_b = min(TILE_B, _round_up(B, 8))
    grid = (pl.cdiv(B, tile_b),)

    out = pl.pallas_call(
        folded_linear_kernel,
        out_shape=jax.ShapeDtypeStruct((B, OUT_FEATURES), jnp.float32),
        grid=grid,
        in_specs=[
            # x streamed tile-by-tile; Pallas double-buffers (prefetch i+1 while computing i).
            pl.BlockSpec((tile_b, IN_FEATURES), lambda i: (i, 0)),
            # folded weight row stays VMEM-resident across the whole grid.
            pl.BlockSpec((1, IN_FEATURES), lambda i: (0, 0)),
            # folded bias scalar lives in SMEM (no per-step VMEM DMA / vreg broadcast).
            pl.BlockSpec(memory_space=pltpu.MemorySpace.SMEM),
        ],
        out_specs=pl.BlockSpec((tile_b, OUT_FEATURES), lambda i: (i, 0)),
        compiler_params=pltpu.CompilerParams(
            # Batch tiles are independent -> megacore sharding on v7x; harmless on v5e/v6e.
            dimension_semantics=("parallel",),
            # 16 MiB double-buffered x + headroom; needed for TILE_B=1024 on v5e's
            # 16 MiB default scoped VMEM, comfortably under physical VMEM on all chips.
            vmem_limit_bytes=40 << 20,
        ),
        cost_estimate=pl.CostEstimate(
            flops=2 * B * IN_FEATURES,
            transcendentals=0,
            bytes_accessed=B * IN_FEATURES * 4 + IN_FEATURES * 4 + B * 4 + 4,
        ),
    )(x, w_eff, b_eff)

    return out


def init_params(key):
    # Deterministic init mimicking PyTorch nn.Linear default:
    # U(-1/sqrt(fan_in), 1/sqrt(fan_in)) for both weight and bias.
    k1, k2, k3, k4 = jax.random.split(key, 4)
    bound1 = 1.0 / jnp.sqrt(IN_FEATURES)
    bound2 = 1.0 / jnp.sqrt(HIDDEN)
    # Stored already transposed relative to PyTorch (which keeps (out, in)).
    w1 = jax.random.uniform(k1, (IN_FEATURES, HIDDEN), jnp.float32, -bound1, bound1)
    b1 = jax.random.uniform(k2, (1, HIDDEN), jnp.float32, -bound1, bound1)
    w2 = jax.random.uniform(k3, (HIDDEN, OUT_FEATURES), jnp.float32, -bound2, bound2)
    b2 = jax.random.uniform(k4, (1, OUT_FEATURES), jnp.float32, -bound2, bound2)
    return w1, b1, w2, b2


if __name__ == "__main__":
    key = jax.random.PRNGKey(0)
    kx1, kx2, kp = jax.random.split(key, 3)

    w1, b1, w2, b2 = init_params(kp)

    # Aligned small batch.
    B1 = 8
    x1 = jax.random.normal(kx1, (B1, IN_FEATURES), jnp.float32)
    out1 = jax.block_until_ready(linear_model_forward(x1, w1, b1, w2, b2))
    ref1 = (x1 @ w1 + b1) @ w2 + b2
    assert out1.shape == (B1, OUT_FEATURES)
    assert jnp.allclose(out1, ref1, atol=1e-4, rtol=1e-4)

    # Non-tile-aligned batch: exercises the ragged (partial-block) path with no padding copy.
    B2 = 20
    x2 = jax.random.normal(kx2, (B2, IN_FEATURES), jnp.float32)
    out2 = jax.block_until_ready(linear_model_forward(x2, w1, b1, w2, b2))
    ref2 = (x2 @ w1 + b1) @ w2 + b2
    assert out2.shape == (B2, OUT_FEATURES)
    assert jnp.allclose(out2, ref2, atol=1e-4, rtol=1e-4)

    print("KERNEL_OK")
</pallas_src>

<mosaic_0001>
module attributes {stable_mosaic.version = 11 : i64} {
  func.func @folded_linear_kernel(%arg0: i32, %arg1: memref<8x2048xf32, #tpu.memory_space<vmem>>, %arg2: memref<1x2048xf32, #tpu.memory_space<vmem>>, %arg3: memref<1x1xf32, #tpu.memory_space<smem>>, %arg4: memref<8x1xf32, #tpu.memory_space<vmem>>) attributes {dimension_semantics = [#tpu.dimension_semantics<parallel>], iteration_bounds = array<i64: 1>, scalar_prefetch = 0 : i64, scratch_operands = 0 : i64, tpu.core_type = #tpu.core_type<tc>, window_params = [{transform_indices = @transform_0, window_bounds = array<i64: 8, 2048>}, {pipeline_mode = #tpu.pipeline_mode<synchronous>, transform_indices = @transform_1, window_bounds = array<i64: 1, 2048>}, {transform_indices = @transform_2, window_bounds = array<i64: 1, 1>}, {transform_indices = @transform_3, window_bounds = array<i64: 8, 1>}]} {
    %c0 = arith.constant 0 : index
    %c0_0 = arith.constant 0 : index
    %0 = vector.load %arg1[%c0, %c0_0] : memref<8x2048xf32, #tpu.memory_space<vmem>>, vector<8x2048xf32>
    %c0_1 = arith.constant 0 : index
    %c0_2 = arith.constant 0 : index
    %1 = vector.load %arg2[%c0_1, %c0_2] : memref<1x2048xf32, #tpu.memory_space<vmem>>, vector<1x2048xf32>
    %2 = vector.broadcast %1 : vector<1x2048xf32> to vector<8x2048xf32>
    %3 = arith.mulf %0, %2 : vector<8x2048xf32>
    %cst = arith.constant dense<0.000000e+00> : vector<8xf32>
    %4 = vector.multi_reduction <add>, %3, %cst [1] : vector<8x2048xf32> to vector<8xf32>
    %5 = vector.shape_cast %4 : vector<8xf32> to vector<8x1xf32>
    %c0_3 = arith.constant 0 : index
    %c0_4 = arith.constant 0 : index
    %6 = memref.load %arg3[%c0_3, %c0_4] : memref<1x1xf32, #tpu.memory_space<smem>>
    %7 = vector.broadcast %6 : f32 to vector<8x1xf32>
    %8 = arith.addf %5, %7 : vector<8x1xf32>
    %c0_5 = arith.constant 0 : index
    %c0_6 = arith.constant 0 : index
    %9 = vector.load %arg4[%c0_5, %c0_6] : memref<8x1xf32, #tpu.memory_space<vmem>>, vector<8x1xf32>
    tpu.vector_store %arg4[%c0_5, %c0_6], %8 {strides = array<i32>} : memref<8x1xf32, #tpu.memory_space<vmem>>, vector<8x1xf32>,
    return
  }
  func.func @transform_0(%arg0: i32) -> (i32, i32) {
    %c0_i32 = arith.constant 0 : i32
    %c0_i32_0 = arith.constant 0 : i32
    return %arg0, %c0_i32 : i32, i32
  }
  func.func @transform_1(%arg0: i32) -> (i32, i32) {
    %c0_i32 = arith.constant 0 : i32
    %c0_i32_0 = arith.constant 0 : i32
    %c0_i32_1 = arith.constant 0 : i32
    return %c0_i32, %c0_i32_0 : i32, i32
  }
  func.func @transform_2(%arg0: i32) -> (i32, i32) {
    %c0_i32 = arith.constant 0 : i32
    %c0_i32_0 = arith.constant 0 : i32
    %c0_i32_1 = arith.constant 0 : i32
    return %c0_i32, %c0_i32_0 : i32, i32
  }
  func.func @transform_3(%arg0: i32) -> (i32, i32) {
    %c0_i32 = arith.constant 0 : i32
    %c0_i32_0 = arith.constant 0 : i32
    return %arg0, %c0_i32 : i32, i32
  }
}

</mosaic_0001>

<llo_original>
// kernel: tpu_custom_call.1
$region0: #{tpu_custom_call.1}
  #allocation0 [shape = 'u32[]', space=smem, size = 0x4, offset = 0x4, fixed_abs, tag = 'smem constant byte address 0x4 - core index']
  #allocation1 [shape = 'u32[144,128]{1,0:T(1,128)}', space=vmem, size = 0x12000, scoped, tag = 'internal scratch']
  #allocation2 [shape = 'f32[1,1]{1,0:T(1,128)S(6)}', space=smem, size = 0x200, scoped, tag = 'scoped memory for tpu_custom_call.1']
  %s0 = inlined_call_operand.hbm [shape: f32[8,2048], index: 0, kind: input, shape index: {}]
  %s1 = inlined_call_operand.hbm [shape: f32[1,2048], index: 1, kind: input, shape index: {}]
  %s2 = inlined_call_operand.<no memory space> [shape: f32[1,1], index: 2, kind: input, shape index: {}]
  %s3 = inlined_call_operand.vmem [shape: f32[8,1], index: 3, kind: output, shape index: {}]
  %s4 = sld [smem:[#allocation0]]
  $region30: #{tpu_custom_call.1} parent=0
    _
  %s6 = ssub.s32 1, %s4
  %s7 = scalar_select 0, %s6, %s4
  %8 = sst [smem:[#allocation2]] %s2
  $region1: #{tpu_custom_call.1} parent=0
    #allocation3 [shape = 'u8[65536]{0}', space=vmem, size = 0x10000, scoped, tag = 'input window, operand 0, single buffered']
    #allocation4 [shape = 's32[1]{0}', space=sflag, size = 0x4, scoped, tag = 'scoped memory for tpu_custom_call.1']
    #allocation5 [shape = 'u8[8192]{0}', space=vmem, size = 0x2000, scoped, tag = 'input window, operand 1, single buffered']
    #allocation6 [shape = 's32[1]{0}', space=sflag, size = 0x4, scoped, tag = 'scoped memory for tpu_custom_call.1']
    %9 = vsyncpa [#allocation4], 0
    %10 = vsyncpa [#allocation6], 0
    // Predicated region
    $region2: #{tpu_custom_call.1} parent=1 // pred_check
      _
    $region3: #{tpu_custom_call.1} parent=1 // pred_check_branch
      %12 = sbr.rel (0) target = $region5
    $region4: #{tpu_custom_call.1} parent=1 // pred_region
      %s14 = ssub.s32 2048, 2048
      %15 = vsyncadd [#allocation4], %s14
      %s17 = sshll.u32 [#allocation3], 4
      %s18 = int_to_ptr.vmem [resolvable:$true] %s17
      %20 = dma.hbm_to_vmem [thread:$0]  %s0, 2048, %s18, [#allocation4]
    $region5: #{tpu_custom_call.1} parent=1 // pred_fallthru
      _
    // Predicated region
    $region6: #{tpu_custom_call.1} parent=1 // pred_check
      _
    $region7: #{tpu_custom_call.1} parent=1 // pred_check_branch
      %22 = sbr.rel (0) target = $region9
    $region8: #{tpu_custom_call.1} parent=1 // pred_region
      %s24 = ssub.s32 256, 256
      %25 = vsyncadd [#allocation6], %s24
      %s27 = sshll.u32 [#allocation5], 4
      %s28 = int_to_ptr.vmem [resolvable:$true] %s27
      %30 = dma.hbm_to_vmem [thread:$0]  %s1, 256, %s28, [#allocation6]
    $region9: #{tpu_custom_call.1} parent=1 // pred_fallthru
      _
    // Predicated region
    $region10: #{tpu_custom_call.1} parent=1 // pred_check
      _
    $region11: #{tpu_custom_call.1} parent=1 // pred_check_branch
      %32 = sbr.rel (0) target = $region13
    $region12: #{tpu_custom_call.1} parent=1 // pred_region
      _
    $region13: #{tpu_custom_call.1} parent=1 // pred_fallthru
      _
    // Predicated region
    $region14: #{tpu_custom_call.1} parent=1 // pred_check
      _
    $region15: #{tpu_custom_call.1} parent=1 // pred_check_branch
      %34 = sbr.rel (0) target = $region17
    $region16: #{tpu_custom_call.1} parent=1 // pred_region
      %35 = dma.done [#allocation4], 2048
    $region17: #{tpu_custom_call.1} parent=1 // pred_fallthru
      _
    // Predicated region
    $region18: #{tpu_custom_call.1} parent=1 // pred_check
      _
    $region19: #{tpu_custom_call.1} parent=1 // pred_check_branch
      %37 = sbr.rel (0) target = $region21
    $region20: #{tpu_custom_call.1} parent=1 // pred_region
      %38 = dma.done [#allocation6], 256
    $region21: #{tpu_custom_call.1} parent=1 // pred_fallthru
      _
    %v39 = vld [vmem:[#allocation3] sm:$0xff]
    %v40 = vld [vmem:[#allocation3 + $0x8] sm:$0xff]
    %v41 = vld [vmem:[#allocation3 + $0x10] sm:$0xff]
    %v42 = vld [vmem:[#allocation3 + $0x18] sm:$0xff]
    %v43 = vld [vmem:[#allocation3 + $0x20] sm:$0xff]
    %v44 = vld [vmem:[#allocation3 + $0x28] sm:$0xff]
    %v45 = vld [vmem:[#allocation3 + $0x30] sm:$0xff]
    %v46 = vld [vmem:[#allocation3 + $0x38] sm:$0xff]
    %v47 = vld [vmem:[#allocation3 + $0x40] sm:$0xff]
    %v48 = vld [vmem:[#allocation3 + $0x48] sm:$0xff]
    %v49 = vld [vmem:[#allocation3 + $0x50] sm:$0xff]
    %v50 = vld [vmem:[#allocation3 + $0x58] sm:$0xff]
    %v51 = vld [vmem:[#allocation3 + $0x60] sm:$0xff]
    %v52 = vld [vmem:[#allocation3 + $0x68] sm:$0xff]
    %v53 = vld [vmem:[#allocation3 + $0x70] sm:$0xff]
    %v54 = vld [vmem:[#allocation3 + $0x78] sm:$0xff]
    %v55 = vld [vmem:[#allocation5] sm:$0xff]
    %v56 = vld [vmem:[#allocation5 + $0x8] sm:$0xff]
    %v59 = vlaneseq
    %v60 = vshrl.u32 %v59, 7
    %v61 = vsub.s32 0, %v60
    %v62 = vrot.slane %v55, %v61
    %v63 = vlaneseq
    %v64 = vshrl.u32 %v63, 7
    %v65 = vsub.s32 1, %v64
    %v66 = vrot.slane %v55, %v65
    %v67 = vlaneseq
    %v68 = vshrl.u32 %v67, 7
    %v69 = vsub.s32 2, %v68
    %v70 = vrot.slane %v55, %v69
    %v71 = vlaneseq
    %v72 = vshrl.u32 %v71, 7
    %v73 = vsub.s32 3, %v72
    %v74 = vrot.slane %v55, %v73
    %v75 = vlaneseq
    %v76 = vshrl.u32 %v75, 7
    %v77 = vsub.s32 4, %v76
    %v78 = vrot.slane %v55, %v77
    %v79 = vlaneseq
    %v80 = vshrl.u32 %v79, 7
    %v81 = vsub.s32 5, %v80
    %v82 = vrot.slane %v55, %v81
    %v83 = vlaneseq
    %v84 = vshrl.u32 %v83, 7
    %v85 = vsub.s32 6, %v84
    %v86 = vrot.slane %v55, %v85
    %v87 = vlaneseq
    %v88 = vshrl.u32 %v87, 7
    %v89 = vsub.s32 7, %v88
    %v90 = vrot.slane %v55, %v89
    %v91 = vlaneseq
    %v92 = vshrl.u32 %v91, 7
    %v93 = vsub.s32 0, %v92
    %v94 = vrot.slane %v56, %v93
    %v95 = vlaneseq
    %v96 = vshrl.u32 %v95, 7
    %v97 = vsub.s32 1, %v96
    %v98 = vrot.slane %v56, %v97
    %v99 = vlaneseq
    %v100 = vshrl.u32 %v99, 7
    %v101 = vsub.s32 2, %v100
    %v102 = vrot.slane %v56, %v101
    %v103 = vlaneseq
    %v104 = vshrl.u32 %v103, 7
    %v105 = vsub.s32 3, %v104
    %v106 = vrot.slane %v56, %v105
    %v107 = vlaneseq
    %v108 = vshrl.u32 %v107, 7
    %v109 = vsub.s32 4, %v108
    %v110 = vrot.slane %v56, %v109
    %v111 = vlaneseq
    %v112 = vshrl.u32 %v111, 7
    %v113 = vsub.s32 5, %v112
    %v114 = vrot.slane %v56, %v113
    %v115 = vlaneseq
    %v116 = vshrl.u32 %v115, 7
    %v117 = vsub.s32 6, %v116
    %v118 = vrot.slane %v56, %v117
    %v119 = vlaneseq
    %v120 = vshrl.u32 %v119, 7
    %v121 = vsub.s32 7, %v120
    %v122 = vrot.slane %v56, %v121
    %v139 = vmul.f32 %v39, %v62
    %v140 = vmul.f32 %v40, %v66
    %v141 = vmul.f32 %v41, %v70
    %v142 = vmul.f32 %v42, %v74
    %v143 = vmul.f32 %v43, %v78
    %v144 = vmul.f32 %v44, %v82
    %v145 = vmul.f32 %v45, %v86
    %v146 = vmul.f32 %v46, %v90
    %v147 = vmul.f32 %v47, %v94
    %v148 = vmul.f32 %v48, %v98
    %v149 = vmul.f32 %v49, %v102
    %v150 = vmul.f32 %v50, %v106
    %v151 = vmul.f32 %v51, %v110
    %v152 = vmul.f32 %v52, %v114
    %v153 = vmul.f32 %v53, %v118
    %v154 = vmul.f32 %v54, %v122
    %v155 = vadd.f32 %v139, %v140
    %v156 = vadd.f32 %v155, %v141
    %v157 = vadd.f32 %v156, %v142
    %v158 = vadd.f32 %v157, %v143
    %v159 = vadd.f32 %v158, %v144
    %v160 = vadd.f32 %v159, %v145
    %v161 = vadd.f32 %v160, %v146
    %v162 = vadd.f32 %v161, %v147
    %v163 = vadd.f32 %v162, %v148
    %v164 = vadd.f32 %v163, %v149
    %v165 = vadd.f32 %v164, %v150
    %v166 = vadd.f32 %v165, %v151
    %v167 = vadd.f32 %v166, %v152
    %v168 = vadd.f32 %v167, %v153
    %v169 = vadd.f32 %v168, %v154
    %170 = vadd.xlane.f32.xlu0 %v169
    %v171 = vpop.xlane.xlu0 %170
    %s172 = sld [smem:[#allocation2]]
    %v173 = vstv %s172
    %v174 = vadd.f32 %v171, %v173
    %vm175 = vcmask 7168
    %176 = vst.msk [vmem:[%s3] sm:$0xff] %vm175, %v174
    // Predicated region
    $region22: #{tpu_custom_call.1} parent=1 // pred_check
      _
    $region23: #{tpu_custom_call.1} parent=1 // pred_check_branch
      %178 = sbr.rel (0) target = $region25
    $region24: #{tpu_custom_call.1} parent=1 // pred_region
      _
    $region25: #{tpu_custom_call.1} parent=1 // pred_fallthru
      _
    // Predicated region
    $region26: #{tpu_custom_call.1} parent=1 // pred_check
      _
    $region27: #{tpu_custom_call.1} parent=1 // pred_check_branch
      %180 = sbr.rel (0) target = $region29
    $region28: #{tpu_custom_call.1} parent=1 // pred_region
      _
    $region29: #{tpu_custom_call.1} parent=1 // pred_fallthru
      _
    %181 = vsyncpa [#allocation4], 1
    %182 = vsyncpa [#allocation6], 1

</llo_original>
